<compile_context>
chip_gen: v5e
topology: v5e:2x2
jax: 0.10.0
libtpu: 0.0.40
codegen_flags: <defaults>
</compile_context>

<pallas_src>
import functools
from typing import NamedTuple, Optional

import jax
import jax.numpy as jnp
from jax.experimental import pallas as pl
from jax.experimental.pallas import tpu as pltpu


class _Layout(NamedTuple):
    B: int
    C: int
    H: int
    W: int
    g: int        # image rows per row-group
    R: int        # row-groups per image (= H / g)
    Lr: int       # raw lane width g*W*C
    L: int        # padded lane width (multiple of 128)
    G: int        # grid size
    M_step: int   # row-groups per grid step
    vmem_limit: Optional[int]


def _residual_block_kernel(x_ref, n1_ref, b1_ref, n2_ref, b2_ref, o_ref, *,
                           rows_per_image):
    # x_ref, o_ref : (M, L)   M = images_per_step * R lane-dense row-groups
    # n*_ref       : (3L, L)  K-stacked banded conv matrices [n(-1); n(0); n(+1)]
    # b*_ref       : (1, L)   bias tiled along (g*W), zero in padded lanes
    v = x_ref[...]
    M, _ = v.shape
    R = rows_per_image

    # Row-group (sublane) index within the slab; rolls that would cross an
    # image top/bottom boundary are zeroed (SAME padding).  This is what makes
    # folding several images into the M dimension exact.
    rid = jax.lax.broadcasted_iota(jnp.int32, v.shape, 0) % R
    not_top = rid != 0            # rows that have a valid row-group above
    not_bot = rid != (R - 1)      # rows that have a valid row-group below
    zero = jnp.zeros_like(v)

    def conv3x3(inp, n_ref, b_ref):
        up = jnp.where(not_top, pltpu.roll(inp, 1, 0), zero)       # inp[p-1]
        dn = jnp.where(not_bot, pltpu.roll(inp, M - 1, 0), zero)   # inp[p+1]
        lhs = jnp.concatenate([up, inp, dn], axis=-1)              # (M, 3L)
        acc = jnp.dot(lhs, n_ref[...], preferred_element_type=jnp.float32)
        return acc + b_ref[...]

    h = jnp.maximum(conv3x3(v, n1_ref, b1_ref), 0.0)   # ReLU stays in vregs
    y = conv3x3(h, n2_ref, b2_ref)
    o_ref[...] = (v + y).astype(o_ref.dtype)           # dense lane store


def build_residual_block_op(w1, b1, w2, b2, x_shape):
    """Precompute the lane-dense banded conv operators for a fixed input shape.

    Run once per weight set (module init).  Returns (params, layout) for the
    jitted per-call path `residual_block_apply`.
    w*: (C, C, 3, 3) torch OIHW, b*: (C,).
    """
    B, C, H, W = x_shape
    WC = W * C

    # Pick g image rows per row-group so the (128-padded) lane axis L is as
    # small as possible, preferring exact multiples of 128 (no padding), then
    # the smallest g.  This avoids the "unlucky g -> huge L" failure mode.
    best = None
    for cand in range(1, H + 1):
        if H % cand:
            continue
        Lr_c = cand * WC
        L_c = -(-Lr_c // 128) * 128
        key = (L_c, L_c != Lr_c, cand)
        if best is None or key < best[0]:
            best = (key, cand, Lr_c, L_c)
    _, g, Lr, L = best
    R = H // g

    if L > 1024:
        raise NotImplementedError(
            "banded-matmul ResidualBlock would need (3L,L) weights with L=%d; "
            "use a C-on-lanes tap-matmul kernel for this shape" % L)

    # Grid: 2 steps when the batch splits evenly into 8-row-aligned slabs (so
    # both v7x TensorCores get work); otherwise fold the whole batch into M.
    if B % 2 == 0 and ((B // 2) * R) % 8 == 0:
        G = 2
    else:
        G = 1
    M_step = (B // G) * R

    # ---- fold conv weights into K-stacked banded matrices (built once) ----
    def band_mats(wt):
        # For each kernel row dh: a banded (WC, WC) matrix folding the dw taps,
        # the Cin->Cout mixing and the left/right zero-padding (rowvec @ mat).
        mats = []
        for dh in range(3):
            m = jnp.zeros((WC, WC), jnp.float32)
            for dw in range(3):
                m = m + jnp.kron(jnp.eye(W, k=1 - dw, dtype=jnp.float32),
                                 wt[:, :, dh, dw].T.astype(jnp.float32))
            mats.append(m)
        return mats

    def stacked_group_mats(wt):
        # Lift per-image-row band matrices to row-group matrices for source
        # group offsets -1 / 0 / +1 (top/bottom padding baked in), pad the lane
        # axis to L, and K-stack them into one (3L, L) MXU operand.
        m3 = band_mats(wt)
        n_m1 = jnp.zeros((Lr, Lr), jnp.float32)
        n_0 = jnp.zeros((Lr, Lr), jnp.float32)
        n_p1 = jnp.zeros((Lr, Lr), jnp.float32)
        for i in range(g):            # dest image-row within group
            for j in range(g):        # source image-row within group
                d = j - i
                if -1 <= d <= 1:
                    n_0 = n_0.at[j * WC:(j + 1) * WC,
                                 i * WC:(i + 1) * WC].set(m3[d + 1])
        n_m1 = n_m1.at[(g - 1) * WC:, :WC].set(m3[0])   # last row of prev group
        n_p1 = n_p1.at[:WC, (g - 1) * WC:].set(m3[2])   # first row of next group
        pad = ((0, L - Lr), (0, L - Lr))
        return jnp.concatenate([jnp.pad(n_m1, pad),
                                jnp.pad(n_0, pad),
                                jnp.pad(n_p1, pad)], axis=0)   # (3L, L)

    def bias_row(b):
        br = jnp.tile(b.astype(jnp.float32), g * W)
        return jnp.pad(br, (0, L - Lr)).reshape(1, L)

    n1s = stacked_group_mats(w1)
    n2s = stacked_group_mats(w2)
    b1r = bias_row(b1)
    b2r = bias_row(b2)

    # ---- VMEM guard (v7x: 64 MiB physical, 32 MiB default scoped) ----
    weight_bytes = 2 * (3 * L * L + L) * 4
    act_bytes = 2 * M_step * L * 4
    scratch_bytes = 10 * M_step * L * 4
    vmem_est = 2 * (weight_bytes + act_bytes) + scratch_bytes + (2 << 20)
    if vmem_est > (56 << 20):
        raise NotImplementedError(
            "banded-matmul ResidualBlock needs ~%d MiB VMEM; does not fit v7x"
            % (vmem_est >> 20))
    vmem_limit = None if vmem_est < (24 << 20) else int(min(vmem_est, 100 << 20))

    layout = _Layout(B, C, H, W, g, R, Lr, L, G, M_step, vmem_limit)
    params = (n1s, b1r, n2s, b2r)
    return params, layout


@functools.partial(jax.jit, static_argnums=(2,))
def residual_block_apply(x_nchw, params, layout):
    """Per-call path: repack -> one pallas_call -> unpack.  `layout` is static."""
    n1s, b1r, n2s, b2r = params
    lo = layout

    # NCHW -> NHWC -> (B*R, Lr) lane-dense row-groups (pad lanes to L if needed).
    x_rows = (jnp.transpose(x_nchw, (0, 2, 3, 1))
              .astype(jnp.float32)
              .reshape(lo.B * lo.R, lo.Lr))
    if lo.L != lo.Lr:
        x_rows = jnp.pad(x_rows, ((0, 0), (0, lo.L - lo.Lr)))

    kernel = functools.partial(_residual_block_kernel, rows_per_image=lo.R)

    out_rows = pl.pallas_call(
        kernel,
        out_shape=jax.ShapeDtypeStruct((lo.B * lo.R, lo.L), jnp.float32),
        grid_spec=pltpu.PrefetchScalarGridSpec(
            num_scalar_prefetch=0,
            grid=(lo.G,),
            in_specs=[
                # activations: one (M_step, L) slab per grid step
                pl.BlockSpec((lo.M_step, lo.L), lambda i: (i, 0)),
                # weights / biases: constant index_map -> DMA'd once, resident
                pl.BlockSpec((3 * lo.L, lo.L), lambda i: (0, 0)),
                pl.BlockSpec((1, lo.L), lambda i: (0, 0)),
                pl.BlockSpec((3 * lo.L, lo.L), lambda i: (0, 0)),
                pl.BlockSpec((1, lo.L), lambda i: (0, 0)),
            ],
            out_specs=pl.BlockSpec((lo.M_step, lo.L), lambda i: (i, 0)),
        ),
        compiler_params=pltpu.CompilerParams(
            dimension_semantics=("parallel",),      # grid steps -> v7x's 2 TCs
            vmem_limit_bytes=lo.vmem_limit,
        ),
    )(x_rows, n1s, b1r, n2s, b2r)

    out = out_rows[:, :lo.Lr].reshape(lo.B, lo.H, lo.W, lo.C)
    return jnp.transpose(out, (0, 3, 1, 2))   # back to NCHW


def residual_block_pallas(x_nchw, w1, b1, w2, b2):
    """One-shot convenience wrapper.  For repeated calls, build the operators
    once with build_residual_block_op and reuse residual_block_apply."""
    params, layout = build_residual_block_op(w1, b1, w2, b2, x_nchw.shape)
    return residual_block_apply(x_nchw, params, layout)


def _reference(x_nchw, w1, b1, w2, b2):
    """Plain-JAX reference matching torch Conv2d(k=3, pad=1) semantics."""
    dn = jax.lax.conv_dimension_numbers(x_nchw.shape, w1.shape,
                                        ("NCHW", "OIHW", "NCHW"))
    h = jax.lax.conv_general_dilated(x_nchw, w1, (1, 1), "SAME",
                                     dimension_numbers=dn)
    h = h + b1.reshape(1, -1, 1, 1)
    h = jnp.maximum(h, 0.0)
    y = jax.lax.conv_general_dilated(h, w2, (1, 1), "SAME",
                                     dimension_numbers=dn)
    y = y + b2.reshape(1, -1, 1, 1)
    return x_nchw + y


if __name__ == "__main__":
    B, C, H, W = 2, 4, 16, 16
    key = jax.random.PRNGKey(0)
    kx, k1, k2, k3, k4 = jax.random.split(key, 5)

    x = jax.random.normal(kx, (B, C, H, W), jnp.float32)

    # Deterministic "Conv2d(channels, channels, 3)"-shaped params.
    fan_in = C * 3 * 3
    bound = 1.0 / (fan_in ** 0.5)
    w1 = jax.random.uniform(k1, (C, C, 3, 3), jnp.float32, -bound, bound)
    b1 = jax.random.uniform(k2, (C,), jnp.float32, -bound, bound)
    w2 = jax.random.uniform(k3, (C, C, 3, 3), jnp.float32, -bound, bound)
    b2 = jax.random.uniform(k4, (C,), jnp.float32, -bound, bound)

    # Build the operators once (init-time), then run the jitted hot path.
    params, layout = build_residual_block_op(w1, b1, w2, b2, x.shape)
    out = residual_block_apply(x, params, layout)
    out = jax.block_until_ready(out)

    ref = _reference(x, w1, b1, w2, b2)
    assert out.shape == (B, C, H, W)
    assert jnp.allclose(out, ref, atol=1e-4, rtol=1e-4), "mismatch vs reference"

    print("KERNEL_OK")
</pallas_src>

<mosaic_0001>
module attributes {stable_mosaic.version = 11 : i64} {
  func.func @_residual_block_kernel(%arg0: i32, %arg1: memref<8x128xf32, #tpu.memory_space<vmem>>, %arg2: memref<384x128xf32, #tpu.memory_space<vmem>>, %arg3: memref<1x128xf32, #tpu.memory_space<vmem>>, %arg4: memref<384x128xf32, #tpu.memory_space<vmem>>, %arg5: memref<1x128xf32, #tpu.memory_space<vmem>>, %arg6: memref<8x128xf32, #tpu.memory_space<vmem>>) attributes {dimension_semantics = [#tpu.dimension_semantics<parallel>], iteration_bounds = array<i64: 2>, scalar_prefetch = 0 : i64, scratch_operands = 0 : i64, tpu.core_type = #tpu.core_type<tc>, window_params = [{transform_indices = @transform_0, window_bounds = array<i64: 8, 128>}, {pipeline_mode = #tpu.pipeline_mode<synchronous>, transform_indices = @transform_1, window_bounds = array<i64: 384, 128>}, {pipeline_mode = #tpu.pipeline_mode<synchronous>, transform_indices = @transform_2, window_bounds = array<i64: 1, 128>}, {pipeline_mode = #tpu.pipeline_mode<synchronous>, transform_indices = @transform_3, window_bounds = array<i64: 384, 128>}, {pipeline_mode = #tpu.pipeline_mode<synchronous>, transform_indices = @transform_4, window_bounds = array<i64: 1, 128>}, {transform_indices = @transform_5, window_bounds = array<i64: 8, 128>}]} {
    %c0 = arith.constant 0 : index
    %c0_0 = arith.constant 0 : index
    %0 = vector.load %arg1[%c0, %c0_0] : memref<8x128xf32, #tpu.memory_space<vmem>>, vector<8x128xf32>
    %1 = tpu.iota {dimensions = array<i32: 0>} : vector<8x128xi32>
    %c8_i32 = arith.constant 8 : i32
    %c0_i32 = arith.constant 0 : i32
    %2 = arith.cmpi eq, %c8_i32, %c0_i32 : i32
    %c1_i32 = arith.constant 1 : i32
    %3 = arith.select %2, %c1_i32, %c8_i32 : i32
    %4 = vector.broadcast %3 : i32 to vector<8x128xi32>
    %5 = arith.remsi %1, %4 : vector<8x128xi32>
    %c0_i32_1 = arith.constant 0 : i32
    %6 = vector.broadcast %c0_i32_1 : i32 to vector<8x128xi32>
    %7 = arith.cmpi ne, %5, %6 : vector<8x128xi32>
    %c0_i32_2 = arith.constant 0 : i32
    %8 = vector.broadcast %c0_i32_2 : i32 to vector<8x128xi32>
    %9 = arith.cmpi slt, %5, %8 : vector<8x128xi32>
    %c0_i32_3 = arith.constant 0 : i32
    %10 = arith.cmpi slt, %3, %c0_i32_3 : i32
    %11 = vector.broadcast %10 : i1 to vector<8x128xi1>
    %12 = vector.broadcast %11 : vector<8x128xi1> to vector<8x128xi1>
    %13 = arith.xori %9, %12 : vector<8x128xi1>
    %14 = arith.andi %13, %7 : vector<8x128xi1>
    %15 = vector.broadcast %3 : i32 to vector<8x128xi32>
    %16 = arith.addi %5, %15 : vector<8x128xi32>
    %17 = arith.select %14, %16, %5 : vector<8x128xi1>, vector<8x128xi32>
    %c0_i32_4 = arith.constant 0 : i32
    %18 = vector.broadcast %c0_i32_4 : i32 to vector<8x128xi32>
    %19 = arith.cmpi ne, %17, %18 : vector<8x128xi32>
    %c7_i32 = arith.constant 7 : i32
    %20 = vector.broadcast %c7_i32 : i32 to vector<8x128xi32>
    %21 = arith.cmpi ne, %17, %20 : vector<8x128xi32>
    %cst = arith.constant 0.000000e+00 : f32
    %22 = vector.broadcast %cst : f32 to vector<8x128xf32>
    %c1_i32_5 = arith.constant 1 : i32
    %23 = tpu.dynamic_rotate %0 by %c1_i32_5 dim 0 : vector<8x128xf32>, i32 -> vector<8x128xf32>
    %24 = arith.select %19, %23, %22 : vector<8x128xi1>, vector<8x128xf32>
    %c7_i32_6 = arith.constant 7 : i32
    %25 = tpu.dynamic_rotate %0 by %c7_i32_6 dim 0 : vector<8x128xf32>, i32 -> vector<8x128xf32>
    %26 = arith.select %21, %25, %22 : vector<8x128xi1>, vector<8x128xf32>
    %27 = tpu.concatenate %24, %0, %26 in 1 : vector<8x128xf32>, vector<8x128xf32>, vector<8x128xf32> -> vector<8x384xf32>
    %c0_7 = arith.constant 0 : index
    %c0_8 = arith.constant 0 : index
    %28 = vector.load %arg2[%c0_7, %c0_8] : memref<384x128xf32, #tpu.memory_space<vmem>>, vector<384x128xf32>
    %cst_9 = arith.constant dense<0.000000e+00> : vector<8x128xf32>
    %29 = tpu.matmul %27, %28, %cst_9 {dimension_numbers = #tpu.dot_dimension_numbers<[1], [0], [0], [1], [0, 0, 1, 1], [], []>} : vector<8x384xf32>, vector<384x128xf32>, vector<8x128xf32> -> vector<8x128xf32>
    %c0_10 = arith.constant 0 : index
    %c0_11 = arith.constant 0 : index
    %30 = vector.load %arg3[%c0_10, %c0_11] : memref<1x128xf32, #tpu.memory_space<vmem>>, vector<1x128xf32>
    %31 = vector.broadcast %30 : vector<1x128xf32> to vector<8x128xf32>
    %32 = arith.addf %29, %31 : vector<8x128xf32>
    %cst_12 = arith.constant 0.000000e+00 : f32
    %33 = vector.broadcast %cst_12 : f32 to vector<8x128xf32>
    %34 = arith.maximumf %32, %33 : vector<8x128xf32>
    %c1_i32_13 = arith.constant 1 : i32
    %35 = tpu.dynamic_rotate %34 by %c1_i32_13 dim 0 : vector<8x128xf32>, i32 -> vector<8x128xf32>
    %36 = arith.select %19, %35, %22 : vector<8x128xi1>, vector<8x128xf32>
    %c7_i32_14 = arith.constant 7 : i32
    %37 = tpu.dynamic_rotate %34 by %c7_i32_14 dim 0 : vector<8x128xf32>, i32 -> vector<8x128xf32>
    %38 = arith.select %21, %37, %22 : vector<8x128xi1>, vector<8x128xf32>
    %39 = tpu.concatenate %36, %34, %38 in 1 : vector<8x128xf32>, vector<8x128xf32>, vector<8x128xf32> -> vector<8x384xf32>
    %c0_15 = arith.constant 0 : index
    %c0_16 = arith.constant 0 : index
    %40 = vector.load %arg4[%c0_15, %c0_16] : memref<384x128xf32, #tpu.memory_space<vmem>>, vector<384x128xf32>
    %cst_17 = arith.constant dense<0.000000e+00> : vector<8x128xf32>
    %41 = tpu.matmul %39, %40, %cst_17 {dimension_numbers = #tpu.dot_dimension_numbers<[1], [0], [0], [1], [0, 0, 1, 1], [], []>} : vector<8x384xf32>, vector<384x128xf32>, vector<8x128xf32> -> vector<8x128xf32>
    %c0_18 = arith.constant 0 : index
    %c0_19 = arith.constant 0 : index
    %42 = vector.load %arg5[%c0_18, %c0_19] : memref<1x128xf32, #tpu.memory_space<vmem>>, vector<1x128xf32>
    %43 = vector.broadcast %42 : vector<1x128xf32> to vector<8x128xf32>
    %44 = arith.addf %41, %43 : vector<8x128xf32>
    %45 = arith.addf %0, %44 : vector<8x128xf32>
    %c0_20 = arith.constant 0 : index
    %c0_21 = arith.constant 0 : index
    %46 = vector.load %arg6[%c0_20, %c0_21] : memref<8x128xf32, #tpu.memory_space<vmem>>, vector<8x128xf32>
    tpu.vector_store %arg6[%c0_20, %c0_21], %45 {strides = array<i32>} : memref<8x128xf32, #tpu.memory_space<vmem>>, vector<8x128xf32>,
    return
  }
  func.func @transform_0(%arg0: i32) -> (i32, i32) {
    %c0_i32 = arith.constant 0 : i32
    %c0_i32_0 = arith.constant 0 : i32
    return %arg0, %c0_i32 : i32, i32
  }
  func.func @transform_1(%arg0: i32) -> (i32, i32) {
    %c0_i32 = arith.constant 0 : i32
    %c0_i32_0 = arith.constant 0 : i32
    %c0_i32_1 = arith.constant 0 : i32
    return %c0_i32, %c0_i32_0 : i32, i32
  }
  func.func @transform_2(%arg0: i32) -> (i32, i32) {
    %c0_i32 = arith.constant 0 : i32
    %c0_i32_0 = arith.constant 0 : i32
    %c0_i32_1 = arith.constant 0 : i32
    return %c0_i32, %c0_i32_0 : i32, i32
  }
  func.func @transform_3(%arg0: i32) -> (i32, i32) {
    %c0_i32 = arith.constant 0 : i32
    %c0_i32_0 = arith.constant 0 : i32
    %c0_i32_1 = arith.constant 0 : i32
    return %c0_i32, %c0_i32_0 : i32, i32
  }
  func.func @transform_4(%arg0: i32) -> (i32, i32) {
    %c0_i32 = arith.constant 0 : i32
    %c0_i32_0 = arith.constant 0 : i32
    %c0_i32_1 = arith.constant 0 : i32
    return %c0_i32, %c0_i32_0 : i32, i32
  }
  func.func @transform_5(%arg0: i32) -> (i32, i32) {
    %c0_i32 = arith.constant 0 : i32
    %c0_i32_0 = arith.constant 0 : i32
    return %arg0, %c0_i32 : i32, i32
  }
}

</mosaic_0001>

<llo_original>
// kernel: residual_block_apply.1
$region0: #{residual_block_apply.1}
  #allocation0 [shape = 'u32[]', space=smem, size = 0x4, offset = 0x4, fixed_abs, tag = 'smem constant byte address 0x4 - core index']
  #allocation1 [shape = 'u32[72,128]{1,0:T(1,128)}', space=vmem, size = 0x9000, scoped, tag = 'internal scratch']
  %s0 = inlined_call_operand.vmem [shape: f32[16,128], index: 0, kind: input, shape index: {}]
  %s1 = inlined_call_operand.vmem [shape: f32[384,128], index: 1, kind: input, shape index: {}]
  %s2 = inlined_call_operand.vmem [shape: f32[1,128], index: 2, kind: input, shape index: {}]
  %s3 = inlined_call_operand.vmem [shape: f32[384,128], index: 3, kind: input, shape index: {}]
  %s4 = inlined_call_operand.vmem [shape: f32[1,128], index: 4, kind: input, shape index: {}]
  %s5 = inlined_call_operand.vmem [shape: f32[16,128], index: 5, kind: output, shape index: {}]
  %s6 = sld [smem:[#allocation0]]
  $region53: #{residual_block_apply.1} parent=0
    _
  %s8 = ssub.s32 1, %s6
  %s9 = scalar_select 0, %s8, %s6
  loop: start=0, step=1, limit=4
  $region2: #{residual_block_apply.1} parent=0 // loop_pre_header
    _
  $region3: #{residual_block_apply.1} parent=0 // loop_header
    %s11 = sphi 0, %s15
    %p12 = scmp.ge.s32.totalorder %s11, 4
    %s21 = sphi 0, %s23
    %s24 = sphi 0, %s21
    %s25 = sphi 0, %s24
    %s41 = sphi 0, %s25
    %s45 = sphi 0, %s45
    %s47 = sphi 0, %s45
    %s48 = sphi 0, %s47
    %s62 = sphi 0, %s48
    %s66 = sphi 0, %s66
    %s68 = sphi 0, %s66
    %s69 = sphi 0, %s68
    %s83 = sphi 0, %s69
    %s87 = sphi 0, %s87
    %s89 = sphi 0, %s87
    %s90 = sphi 0, %s89
    %s104 = sphi 0, %s90
    %s108 = sphi 0, %s108
    %s110 = sphi 0, %s108
    %s111 = sphi 0, %s110
    %s125 = sphi 0, %s111
    %s131 = sphi 0, %s133
    %s134 = sphi 0, %s131
    %s135 = sphi 0, %s134
    %s151 = sphi 0, %s135
  $region4: #{residual_block_apply.1} parent=0 // loop_header_branch
    %14 = sbr.rel (%p12) target = $region8
  $region5: #{residual_block_apply.1} parent=0 // loop_body
    %s16 = ssub.s32 %s11, 1
    %s17 = ssub.s32 %s11, 2
    %s18 = sadd.s32 %s11, 1
    %s19 = ssub.s32 %s11, %s18
    %p20 = scmp.eq.s32.totalorder %s19, 0
    %s22 = sadd.s32 %s21, 1
    %s23 = scalar_select %p20, %s21, %s22
    %p26 = pneg %p20
    %p27 = scmp.eq.s32.totalorder %s11, 1
    %p28 = por %p26, %p27
    %p29 = scmp.ne.s32.totalorder %s21, %s24
    %p30 = scmp.eq.s32.totalorder %s11, 0
    %p31 = por %p29, %p30
    %p32 = scmp.ne.s32.totalorder %s21, %s24
    %p33 = scmp.eq.s32.totalorder %s16, 1
    %p34 = por %p32, %p33
    %p35 = scmp.ne.s32.totalorder %s24, %s25
    %p36 = scmp.eq.s32.totalorder %s16, 0
    %p37 = por %p35, %p36
    %p38 = scmp.ne.s32.totalorder %s24, %s25
    %p39 = scmp.eq.s32.totalorder %s17, 1
    %p40 = por %p38, %p39
    %p42 = scmp.ne.s32.totalorder %s25, %s41
    %p43 = scmp.eq.s32.totalorder %s17, 0
    %p44 = por %p42, %p43
    %s46 = sadd.s32 %s45, 1
    %p49 = scmp.eq.s32.totalorder %s11, 1
    %p50 = scmp.ne.s32.totalorder %s45, %s47
    %p51 = scmp.eq.s32.totalorder %s11, 0
    %p52 = por %p50, %p51
    %p53 = scmp.ne.s32.totalorder %s45, %s47
    %p54 = scmp.eq.s32.totalorder %s16, 1
    %p55 = por %p53, %p54
    %p56 = scmp.ne.s32.totalorder %s47, %s48
    %p57 = scmp.eq.s32.totalorder %s16, 0
    %p58 = por %p56, %p57
    %p59 = scmp.ne.s32.totalorder %s47, %s48
    %p60 = scmp.eq.s32.totalorder %s17, 1
    %p61 = por %p59, %p60
    %p63 = scmp.ne.s32.totalorder %s48, %s62
    %p64 = scmp.eq.s32.totalorder %s17, 0
    %p65 = por %p63, %p64
    %s67 = sadd.s32 %s66, 1
    %p70 = scmp.eq.s32.totalorder %s11, 1
    %p71 = scmp.ne.s32.totalorder %s66, %s68
    %p72 = scmp.eq.s32.totalorder %s11, 0
    %p73 = por %p71, %p72
    %p74 = scmp.ne.s32.totalorder %s66, %s68
    %p75 = scmp.eq.s32.totalorder %s16, 1
    %p76 = por %p74, %p75
    %p77 = scmp.ne.s32.totalorder %s68, %s69
    %p78 = scmp.eq.s32.totalorder %s16, 0
    %p79 = por %p77, %p78
    %p80 = scmp.ne.s32.totalorder %s68, %s69
    %p81 = scmp.eq.s32.totalorder %s17, 1
    %p82 = por %p80, %p81
    %p84 = scmp.ne.s32.totalorder %s69, %s83
    %p85 = scmp.eq.s32.totalorder %s17, 0
    %p86 = por %p84, %p85
    %s88 = sadd.s32 %s87, 1
    %p91 = scmp.eq.s32.totalorder %s11, 1
    %p92 = scmp.ne.s32.totalorder %s87, %s89
    %p93 = scmp.eq.s32.totalorder %s11, 0
    %p94 = por %p92, %p93
    %p95 = scmp.ne.s32.totalorder %s87, %s89
    %p96 = scmp.eq.s32.totalorder %s16, 1
    %p97 = por %p95, %p96
    %p98 = scmp.ne.s32.totalorder %s89, %s90
    %p99 = scmp.eq.s32.totalorder %s16, 0
    %p100 = por %p98, %p99
    %p101 = scmp.ne.s32.totalorder %s89, %s90
    %p102 = scmp.eq.s32.totalorder %s17, 1
    %p103 = por %p101, %p102
    %p105 = scmp.ne.s32.totalorder %s90, %s104
    %p106 = scmp.eq.s32.totalorder %s17, 0
    %p107 = por %p105, %p106
    %s109 = sadd.s32 %s108, 1
    %p112 = scmp.eq.s32.totalorder %s11, 1
    %p113 = scmp.ne.s32.totalorder %s108, %s110
    %p114 = scmp.eq.s32.totalorder %s11, 0
    %p115 = por %p113, %p114
    %p116 = scmp.ne.s32.totalorder %s108, %s110
    %p117 = scmp.eq.s32.totalorder %s16, 1
    %p118 = por %p116, %p117
    %p119 = scmp.ne.s32.totalorder %s110, %s111
    %p120 = scmp.eq.s32.totalorder %s16, 0
    %p121 = por %p119, %p120
    %p122 = scmp.ne.s32.totalorder %s110, %s111
    %p123 = scmp.eq.s32.totalorder %s17, 1
    %p124 = por %p122, %p123
    %p126 = scmp.ne.s32.totalorder %s111, %s125
    %p127 = scmp.eq.s32.totalorder %s17, 0
    %p128 = por %p126, %p127
    %s129 = ssub.s32 %s11, %s18
    %p130 = scmp.eq.s32.totalorder %s129, 0
    %s132 = sadd.s32 %s131, 1
    %s133 = scalar_select %p130, %s131, %s132
    %p136 = pneg %p130
    %p137 = scmp.eq.s32.totalorder %s11, 1
    %p138 = por %p136, %p137
    %p139 = scmp.ne.s32.totalorder %s131, %s134
    %p140 = scmp.eq.s32.totalorder %s11, 0
    %p141 = por %p139, %p140
    %p142 = scmp.ne.s32.totalorder %s131, %s134
    %p143 = scmp.eq.s32.totalorder %s16, 1
    %p144 = por %p142, %p143
    %p145 = scmp.ne.s32.totalorder %s134, %s135
    %p146 = scmp.eq.s32.totalorder %s16, 0
    %p147 = por %p145, %p146
    %p148 = scmp.ne.s32.totalorder %s134, %s135
    %p149 = scmp.eq.s32.totalorder %s17, 1
    %p150 = por %p148, %p149
    %p152 = scmp.ne.s32.totalorder %s135, %s151
    %p153 = scmp.eq.s32.totalorder %s17, 0
    %p154 = por %p152, %p153
    %p155 = scmp.le.s32.totalorder 1, %s11
    %p156 = scmp.lt.s32.totalorder %s11, 3
    %p157 = pnand %p155, %p156
    %p158 = pneg %p157
    // Predicated region
    $region9: #{residual_block_apply.1} parent=5 // pred_check
      _
    $region10: #{residual_block_apply.1} parent=5 // pred_check_branch
      %160 = sbr.rel (%p157) target = $region12
    $region11: #{residual_block_apply.1} parent=5 // pred_region
      %s161 = ssub.s32 %s11, 1
      // Predicated region
      $region13: #{residual_block_apply.1} parent=11 // pred_check
        %p162 = pneg %p58
      $region14: #{residual_block_apply.1} parent=11 // pred_check_branch
        %164 = sbr.rel (%p162) target = $region16
      $region15: #{residual_block_apply.1} parent=11 // pred_region
        _
      $region16: #{residual_block_apply.1} parent=11 // pred_fallthru
        _
      // Predicated region
      $region17: #{residual_block_apply.1} parent=11 // pred_check
        %p165 = pneg %p79
      $region18: #{residual_block_apply.1} parent=11 // pred_check_branch
        %167 = sbr.rel (%p165) target = $region20
      $region19: #{residual_block_apply.1} parent=11 // pred_region
        _
      $region20: #{residual_block_apply.1} parent=11 // pred_fallthru
        _
      // Predicated region
      $region21: #{residual_block_apply.1} parent=11 // pred_check
        %p168 = pneg %p100
      $region22: #{residual_block_apply.1} parent=11 // pred_check_branch
        %170 = sbr.rel (%p168) target = $region24
      $region23: #{residual_block_apply.1} parent=11 // pred_region
        _
      $region24: #{residual_block_apply.1} parent=11 // pred_fallthru
        _
      // Predicated region
      $region25: #{residual_block_apply.1} parent=11 // pred_check
        %p171 = pneg %p121
      $region26: #{residual_block_apply.1} parent=11 // pred_check_branch
        %173 = sbr.rel (%p171) target = $region28
      $region27: #{residual_block_apply.1} parent=11 // pred_region
        _
      $region28: #{residual_block_apply.1} parent=11 // pred_fallthru
        _
    $region12: #{residual_block_apply.1} parent=5 // pred_fallthru
      _
    %p174 = scmp.lt.s32.totalorder %s11, 2
    // Predicated region
    $region29: #{residual_block_apply.1} parent=5 // pred_check
      %p175 = pneg %p174
    $region30: #{residual_block_apply.1} parent=5 // pred_check_branch
      %177 = sbr.rel (%p175) target = $region32
    $region31: #{residual_block_apply.1} parent=5 // pred_region
      // Predicated region
      $region33: #{residual_block_apply.1} parent=31 // pred_check
        %p178 = pneg %p31
      $region34: #{residual_block_apply.1} parent=31 // pred_check_branch
        %180 = sbr.rel (%p178) target = $region36
      $region35: #{residual_block_apply.1} parent=31 // pred_region
        %p181 = scmp.lt.s32.totalorder %s11, 1
        %s182 = scalar_select %p181, %s11, 1
        %s183 = smul.addr %s182, 8
        %s184 = scalar_lea.vmem %s0, %s183
      $region36: #{residual_block_apply.1} parent=31 // pred_fallthru
        _
    $region32: #{residual_block_apply.1} parent=5 // pred_fallthru
      _
    %p185 = scmp.le.s32.totalorder 1, %s11
    %p186 = scmp.lt.s32.totalorder %s11, 3
    %p187 = pnand %p185, %p186
    %p188 = pneg %p187
    // Predicated region
    $region37: #{residual_block_apply.1} parent=5 // pred_check
      _
    $region38: #{residual_block_apply.1} parent=5 // pred_check_branch
      %190 = sbr.rel (%p187) target = $region40
    $region39: #{residual_block_apply.1} parent=5 // pred_region
      %s191 = ssub.s32 %s11, 1
      %p192 = scmp.lt.s32.totalorder %s16, 1
      %s193 = scalar_select %p192, %s16, 1
      %s194 = smul.addr %s193, 8
      %s195 = scalar_lea.vmem %s0, %s194
      %p196 = pneg %p37
      %p197 = pneg %p34
      %p198 = pneg %p58
      %p199 = pneg %p55
      %p200 = pneg %p79
      %p201 = pneg %p76
      %p202 = pneg %p100
      %p203 = pneg %p97
      %p204 = pneg %p121
      %p205 = pneg %p118
      %p206 = pneg %p147
      %p207 = pneg %p144
      %p208 = scmp.lt.s32.totalorder %s16, 1
      %s209 = scalar_select %p208, %s16, 1
      %s210 = smul.addr %s209, 8
      %s211 = scalar_lea.vmem %s5, %s210
      %p212 = scmp.lt.s32.totalorder %s16, 1
      %s213 = scalar_select %p212, %s16, 1
      %s214 = smul.addr %s213, 8
      %s215 = scalar_lea.vmem %s0, %s214
      %p216 = scmp.lt.s32.totalorder %s16, 1
      %s217 = scalar_select %p216, %s16, 1
      %s218 = smul.addr %s217, 8
      %s219 = scalar_lea.vmem %s5, %s218
      %v220 = vld [vmem:[%s215] sm:$0xff]
      %v221 = vlaneseq
      %v222 = vshrl.u32 %v221, 7
      %vm223 = vcmp.lt.s32.totalorder %v222, 0
      %v224 = vsub.s32 0, %v222
      %v225 = vsel %vm223, %v224, %v222
      %v226 = vshrl.u32 %v225, 3
      %v227 = vand.u32 %v225, 7
      %v228 = vsub.s32 0, %v227
      %v229 = vsel %vm223, %v228, %v227
      %vm230 = vcmp.ne.s32.totalorder %v229, 0
      %vm231 = vcmp.lt.s32.totalorder %v229, 0
      %vm232 = vmand %vm231, %vm230
      %v233 = vadd.s32 %v229, 8
      %v234 = vsel %vm232, %v233, %v229
      %vm235 = vcmp.ne.s32.totalorder %v234, 0
      %vm236 = vcmp.ne.s32.totalorder %v234, 7
      %v237 = vrot.slane %v220, 7
      %v238 = vsel %vm235, %v237, 0.0
      %v239 = vrot.slane %v220, 1
      %v240 = vsel %vm236, %v239, 0.0
      %v241 = vld [vmem:[%s1] sm:$0xff]
      %v242 = vld [vmem:[%s1 + $0x8] sm:$0xff]
      %v243 = vld [vmem:[%s1 + $0x10] sm:$0xff]
      %v244 = vld [vmem:[%s1 + $0x18] sm:$0xff]
      %v245 = vld [vmem:[%s1 + $0x20] sm:$0xff]
      %v246 = vld [vmem:[%s1 + $0x28] sm:$0xff]
      %v247 = vld [vmem:[%s1 + $0x30] sm:$0xff]
      %v248 = vld [vmem:[%s1 + $0x38] sm:$0xff]
      %v249 = vld [vmem:[%s1 + $0x40] sm:$0xff]
      %v250 = vld [vmem:[%s1 + $0x48] sm:$0xff]
      %v251 = vld [vmem:[%s1 + $0x50] sm:$0xff]
      %v252 = vld [vmem:[%s1 + $0x58] sm:$0xff]
      %v253 = vld [vmem:[%s1 + $0x60] sm:$0xff]
      %v254 = vld [vmem:[%s1 + $0x68] sm:$0xff]
      %v255 = vld [vmem:[%s1 + $0x70] sm:$0xff]
      %v256 = vld [vmem:[%s1 + $0x78] sm:$0xff]
      %v257 = vld [vmem:[%s1 + $0x80] sm:$0xff]
      %v258 = vld [vmem:[%s1 + $0x88] sm:$0xff]
      %v259 = vld [vmem:[%s1 + $0x90] sm:$0xff]
      %v260 = vld [vmem:[%s1 + $0x98] sm:$0xff]
      %v261 = vld [vmem:[%s1 + $0xa0] sm:$0xff]
      %v262 = vld [vmem:[%s1 + $0xa8] sm:$0xff]
      %v263 = vld [vmem:[%s1 + $0xb0] sm:$0xff]
      %v264 = vld [vmem:[%s1 + $0xb8] sm:$0xff]
      %v265 = vld [vmem:[%s1 + $0xc0] sm:$0xff]
      %v266 = vld [vmem:[%s1 + $0xc8] sm:$0xff]
      %v267 = vld [vmem:[%s1 + $0xd0] sm:$0xff]
      %v268 = vld [vmem:[%s1 + $0xd8] sm:$0xff]
      %v269 = vld [vmem:[%s1 + $0xe0] sm:$0xff]
      %v270 = vld [vmem:[%s1 + $0xe8] sm:$0xff]
      %v271 = vld [vmem:[%s1 + $0xf0] sm:$0xff]
      %v272 = vld [vmem:[%s1 + $0xf8] sm:$0xff]
      %v273 = vld [vmem:[%s1 + $0x100] sm:$0xff]
      %v274 = vld [vmem:[%s1 + $0x108] sm:$0xff]
      %v275 = vld [vmem:[%s1 + $0x110] sm:$0xff]
      %v276 = vld [vmem:[%s1 + $0x118] sm:$0xff]
      %v277 = vld [vmem:[%s1 + $0x120] sm:$0xff]
      %v278 = vld [vmem:[%s1 + $0x128] sm:$0xff]
      %v279 = vld [vmem:[%s1 + $0x130] sm:$0xff]
      %v280 = vld [vmem:[%s1 + $0x138] sm:$0xff]
      %v281 = vld [vmem:[%s1 + $0x140] sm:$0xff]
      %v282 = vld [vmem:[%s1 + $0x148] sm:$0xff]
      %v283 = vld [vmem:[%s1 + $0x150] sm:$0xff]
      %v284 = vld [vmem:[%s1 + $0x158] sm:$0xff]
      %v285 = vld [vmem:[%s1 + $0x160] sm:$0xff]
      %v286 = vld [vmem:[%s1 + $0x168] sm:$0xff]
      %v287 = vld [vmem:[%s1 + $0x170] sm:$0xff]
      %v288 = vld [vmem:[%s1 + $0x178] sm:$0xff]
      %v289 = vld [vmem:[%s2] sm:$0x1]
      %v291 = vperm.slane %v289, 0
      %293 = vmatpush.msra.mxu0 %v256
      %294 = vmatpush.msra.mxu0 %v255
      %295 = vmatpush.msra.mxu0 %v254
      %296 = vmatpush.msra.mxu0 %v253
      %297 = vmatpush.msra.mxu0 %v252
      %298 = vmatpush.msra.mxu0 %v251
      %299 = vmatpush.msra.mxu0 %v250
      %300 = vmatpush.msra.mxu0 %v249
      %301 = vmatpush.msra.mxu0 %v248
      %302 = vmatpush.msra.mxu0 %v247
      %303 = vmatpush.msra.mxu0 %v246
      %304 = vmatpush.msra.mxu0 %v245
      %305 = vmatpush.msra.mxu0 %v244
      %306 = vmatpush.msra.mxu0 %v243
      %307 = vmatpush.msra.mxu0 %v242
      %308 = vmatpush.msra.mxu0 %v241
      %309 = vmatmul.f32.gmra.mxu0 %v238
      %v310 = vpop.f32.mrf.mxu0
      %v311 = vadd.f32 %v291, %v310
      %312 = vdwg.mxu0
      %313 = vmatpush.msra.mxu0 %v272
      %314 = vmatpush.msra.mxu0 %v271
      %315 = vmatpush.msra.mxu0 %v270
      %316 = vmatpush.msra.mxu0 %v269
      %317 = vmatpush.msra.mxu0 %v268
      %318 = vmatpush.msra.mxu0 %v267
      %319 = vmatpush.msra.mxu0 %v266
      %320 = vmatpush.msra.mxu0 %v265
      %321 = vmatpush.msra.mxu0 %v264
      %322 = vmatpush.msra.mxu0 %v263
      %323 = vmatpush.msra.mxu0 %v262
      %324 = vmatpush.msra.mxu0 %v261
      %325 = vmatpush.msra.mxu0 %v260
      %326 = vmatpush.msra.mxu0 %v259
      %327 = vmatpush.msra.mxu0 %v258
      %328 = vmatpush.msra.mxu0 %v257
      %329 = vmatmul.f32.gmra.mxu0 %v220
      %v330 = vpop.f32.mrf.mxu0
      %v331 = vadd.f32 %v311, %v330
      %332 = vdwg.mxu0
      %333 = vmatpush.msra.mxu0 %v288
      %334 = vmatpush.msra.mxu0 %v287
      %335 = vmatpush.msra.mxu0 %v286
      %336 = vmatpush.msra.mxu0 %v285
      %337 = vmatpush.msra.mxu0 %v284
      %338 = vmatpush.msra.mxu0 %v283
      %339 = vmatpush.msra.mxu0 %v282
      %340 = vmatpush.msra.mxu0 %v281
      %341 = vmatpush.msra.mxu0 %v280
      %342 = vmatpush.msra.mxu0 %v279
      %343 = vmatpush.msra.mxu0 %v278
      %344 = vmatpush.msra.mxu0 %v277
      %345 = vmatpush.msra.mxu0 %v276
      %346 = vmatpush.msra.mxu0 %v275
      %347 = vmatpush.msra.mxu0 %v274
      %348 = vmatpush.msra.mxu0 %v273
      %349 = vmatmul.f32.gmra.mxu0 %v240
      %v350 = vpop.f32.mrf.mxu0
      %v351 = vadd.f32 %v331, %v350
      %352 = vdwg.mxu0
      %v353 = vmax.f32 %v351, 0.0
      %v354 = vrot.slane %v353, 7
      %v355 = vsel %vm235, %v354, 0.0
      %v356 = vrot.slane %v353, 1
      %v357 = vsel %vm236, %v356, 0.0
      %v358 = vld [vmem:[%s3] sm:$0xff]
      %v359 = vld [vmem:[%s3 + $0x8] sm:$0xff]
      %v360 = vld [vmem:[%s3 + $0x10] sm:$0xff]
      %v361 = vld [vmem:[%s3 + $0x18] sm:$0xff]
      %v362 = vld [vmem:[%s3 + $0x20] sm:$0xff]
      %v363 = vld [vmem:[%s3 + $0x28] sm:$0xff]
      %v364 = vld [vmem:[%s3 + $0x30] sm:$0xff]
      %v365 = vld [vmem:[%s3 + $0x38] sm:$0xff]
      %v366 = vld [vmem:[%s3 + $0x40] sm:$0xff]
      %v367 = vld [vmem:[%s3 + $0x48] sm:$0xff]
      %v368 = vld [vmem:[%s3 + $0x50] sm:$0xff]
      %v369 = vld [vmem:[%s3 + $0x58] sm:$0xff]
      %v370 = vld [vmem:[%s3 + $0x60] sm:$0xff]
      %v371 = vld [vmem:[%s3 + $0x68] sm:$0xff]
      %v372 = vld [vmem:[%s3 + $0x70] sm:$0xff]
      %v373 = vld [vmem:[%s3 + $0x78] sm:$0xff]
      %v374 = vld [vmem:[%s3 + $0x80] sm:$0xff]
      %v375 = vld [vmem:[%s3 + $0x88] sm:$0xff]
      %v376 = vld [vmem:[%s3 + $0x90] sm:$0xff]
      %v377 = vld [vmem:[%s3 + $0x98] sm:$0xff]
      %v378 = vld [vmem:[%s3 + $0xa0] sm:$0xff]
      %v379 = vld [vmem:[%s3 + $0xa8] sm:$0xff]
      %v380 = vld [vmem:[%s3 + $0xb0] sm:$0xff]
      %v381 = vld [vmem:[%s3 + $0xb8] sm:$0xff]
      %v382 = vld [vmem:[%s3 + $0xc0] sm:$0xff]
      %v383 = vld [vmem:[%s3 + $0xc8] sm:$0xff]
      %v384 = vld [vmem:[%s3 + $0xd0] sm:$0xff]
      %v385 = vld [vmem:[%s3 + $0xd8] sm:$0xff]
      %v386 = vld [vmem:[%s3 + $0xe0] sm:$0xff]
      %v387 = vld [vmem:[%s3 + $0xe8] sm:$0xff]
      %v388 = vld [vmem:[%s3 + $0xf0] sm:$0xff]
      %v389 = vld [vmem:[%s3 + $0xf8] sm:$0xff]
      %v390 = vld [vmem:[%s3 + $0x100] sm:$0xff]
      %v391 = vld [vmem:[%s3 + $0x108] sm:$0xff]
      %v392 = vld [vmem:[%s3 + $0x110] sm:$0xff]
      %v393 = vld [vmem:[%s3 + $0x118] sm:$0xff]
      %v394 = vld [vmem:[%s3 + $0x120] sm:$0xff]
      %v395 = vld [vmem:[%s3 + $0x128] sm:$0xff]
      %v396 = vld [vmem:[%s3 + $0x130] sm:$0xff]
      %v397 = vld [vmem:[%s3 + $0x138] sm:$0xff]
      %v398 = vld [vmem:[%s3 + $0x140] sm:$0xff]
      %v399 = vld [vmem:[%s3 + $0x148] sm:$0xff]
      %v400 = vld [vmem:[%s3 + $0x150] sm:$0xff]
      %v401 = vld [vmem:[%s3 + $0x158] sm:$0xff]
      %v402 = vld [vmem:[%s3 + $0x160] sm:$0xff]
      %v403 = vld [vmem:[%s3 + $0x168] sm:$0xff]
      %v404 = vld [vmem:[%s3 + $0x170] sm:$0xff]
      %v405 = vld [vmem:[%s3 + $0x178] sm:$0xff]
      %v406 = vld [vmem:[%s4] sm:$0x1]
      %v408 = vperm.slane %v406, 0
      %410 = vmatpush.msra.mxu0 %v373
      %411 = vmatpush.msra.mxu0 %v372
      %412 = vmatpush.msra.mxu0 %v371
      %413 = vmatpush.msra.mxu0 %v370
      %414 = vmatpush.msra.mxu0 %v369
      %415 = vmatpush.msra.mxu0 %v368
      %416 = vmatpush.msra.mxu0 %v367
      %417 = vmatpush.msra.mxu0 %v366
      %418 = vmatpush.msra.mxu0 %v365
      %419 = vmatpush.msra.mxu0 %v364
      %420 = vmatpush.msra.mxu0 %v363
      %421 = vmatpush.msra.mxu0 %v362
      %422 = vmatpush.msra.mxu0 %v361
      %423 = vmatpush.msra.mxu0 %v360
      %424 = vmatpush.msra.mxu0 %v359
      %425 = vmatpush.msra.mxu0 %v358
      %426 = vmatmul.f32.gmra.mxu0 %v355
      %v427 = vpop.f32.mrf.mxu0
      %v428 = vadd.f32 %v408, %v427
      %429 = vdwg.mxu0
      %430 = vmatpush.msra.mxu0 %v389
      %431 = vmatpush.msra.mxu0 %v388
      %432 = vmatpush.msra.mxu0 %v387
      %433 = vmatpush.msra.mxu0 %v386
      %434 = vmatpush.msra.mxu0 %v385
      %435 = vmatpush.msra.mxu0 %v384
      %436 = vmatpush.msra.mxu0 %v383
      %437 = vmatpush.msra.mxu0 %v382
      %438 = vmatpush.msra.mxu0 %v381
      %439 = vmatpush.msra.mxu0 %v380
      %440 = vmatpush.msra.mxu0 %v379
      %441 = vmatpush.msra.mxu0 %v378
      %442 = vmatpush.msra.mxu0 %v377
      %443 = vmatpush.msra.mxu0 %v376
      %444 = vmatpush.msra.mxu0 %v375
      %445 = vmatpush.msra.mxu0 %v374
      %446 = vmatmul.f32.gmra.mxu0 %v353
      %v447 = vpop.f32.mrf.mxu0
      %v448 = vadd.f32 %v428, %v447
      %449 = vdwg.mxu0
      %450 = vmatpush.msra.mxu0 %v405
      %451 = vmatpush.msra.mxu0 %v404
      %452 = vmatpush.msra.mxu0 %v403
      %453 = vmatpush.msra.mxu0 %v402
      %454 = vmatpush.msra.mxu0 %v401
      %455 = vmatpush.msra.mxu0 %v400
      %456 = vmatpush.msra.mxu0 %v399
      %457 = vmatpush.msra.mxu0 %v398
      %458 = vmatpush.msra.mxu0 %v397
      %459 = vmatpush.msra.mxu0 %v396
      %460 = vmatpush.msra.mxu0 %v395
      %461 = vmatpush.msra.mxu0 %v394
      %462 = vmatpush.msra.mxu0 %v393
      %463 = vmatpush.msra.mxu0 %v392
      %464 = vmatpush.msra.mxu0 %v391
      %465 = vmatpush.msra.mxu0 %v390
      %466 = vmatmul.f32.gmra.mxu0 %v357
      %v467 = vpop.f32.mrf.mxu0
      %v468 = vadd.f32 %v448, %v467
      %469 = vdwg.mxu0
      %v470 = vadd.f32 %v220, %v468
      %471 = vst [vmem:[%s219] sm:$0xff] %v470
      %p472 = scmp.lt.s32.totalorder %s16, 1
      %s473 = scalar_select %p472, %s16, 1
      %s474 = smul.addr %s473, 8
      %s475 = scalar_lea.vmem %s5, %s474
      // Predicated region
      $region41: #{residual_block_apply.1} parent=39 // pred_check
        %p476 = pneg %p144
      $region42: #{residual_block_apply.1} parent=39 // pred_check_branch
        %478 = sbr.rel (%p476) target = $region44
      $region43: #{residual_block_apply.1} parent=39 // pred_region
        _
      $region44: #{residual_block_apply.1} parent=39 // pred_fallthru
        _
    $region40: #{residual_block_apply.1} parent=5 // pred_fallthru
      _
    %p479 = scmp.le.s32.totalorder 2, %s11
    // Predicated region
    $region45: #{residual_block_apply.1} parent=5 // pred_check
      %p480 = pneg %p479
    $region46: #{residual_block_apply.1} parent=5 // pred_check_branch
      %482 = sbr.rel (%p480) target = $region48
    $region47: #{residual_block_apply.1} parent=5 // pred_region
      %s483 = ssub.s32 %s11, 2
      // Predicated region
      $region49: #{residual_block_apply.1} parent=47 // pred_check
        %p484 = pneg %p150
      $region50: #{residual_block_apply.1} parent=47 // pred_check_branch
        %486 = sbr.rel (%p484) target = $region52
      $region51: #{residual_block_apply.1} parent=47 // pred_region
        %p487 = scmp.lt.s32.totalorder %s17, 1
        %s488 = scalar_select %p487, %s17, 1
        %s489 = smul.addr %s488, 8
        %s490 = scalar_lea.vmem %s5, %s489
      $region52: #{residual_block_apply.1} parent=47 // pred_fallthru
        _
    $region48: #{residual_block_apply.1} parent=5 // pred_fallthru
      _
  $region6: #{residual_block_apply.1} parent=0 // loop_footer
    %s15 = sadd.s32 1, %s11
  $region7: #{residual_block_apply.1} parent=0 // loop_footer_branch
    %10 = sbr.rel target = $region3
  $region8: #{residual_block_apply.1} parent=0 // loop_exit
    _

</llo_original>
